<compile_context>
chip_gen: v5e
topology: v5e:2x2
jax: 0.10.0
libtpu: 0.0.40
codegen_flags: <defaults>
</compile_context>

<pallas_src>
import random

import jax
import jax.numpy as jnp
from jax.experimental import pallas as pl
from jax.experimental.pallas import tpu as pltpu

_LANES = 128
_SUBLANES = 8
_MAX_TILE_ROWS = 1024


def _pink_merge_kernel(scales_ref, img0_ref, pink_ref, out_ref):
    # normalise(pink) * power  ==  pink * scale + offset   (scale/offset in SMEM)
    scale = scales_ref[0]
    offset = scales_ref[1]
    pink = pink_ref[...] * scale + offset
    # np.where(img0 > pink, img0, pink) == elementwise max for finite inputs.
    out_ref[...] = jnp.maximum(img0_ref[...], pink)


def add_pink_noise_pallas(img, pink_raw, power):
    """img: (C, H, W) float; pink_raw: (H, W) float; power: python float."""
    C, H, W = img.shape
    orig_dtype = img.dtype

    # normalise(pink, convert=False, fix_range=False):
    #   flipud, subtract min, divide by max-of-shifted  ->  folded to scale/offset.
    pink = jnp.flipud(pink_raw).astype(jnp.float32)
    pmin = jnp.min(pink)
    denom = jnp.max(pink) - pmin
    denom = jnp.where(denom > 0, denom, jnp.float32(1.0))   # guard constant pink
    scale = jnp.float32(power) / denom
    offset = -pmin * scale
    scales = jnp.stack([scale, offset]).astype(jnp.float32)

    # Lane-dense layout: flatten the (H, W) plane to (rows, 128), pad rows so the
    # block shape tiles evenly (multiple of 8 sublanes, multiple of tile_r rows).
    n = H * W
    rows = pl.cdiv(n, _LANES)
    tile_r = min(_MAX_TILE_ROWS, pl.cdiv(rows, _SUBLANES) * _SUBLANES)
    rows_pad = pl.cdiv(rows, tile_r) * tile_r
    n_pad = rows_pad * _LANES

    def to_plane(x):
        flat = x.reshape(-1).astype(jnp.float32)
        flat = jnp.pad(flat, (0, n_pad - n))
        return flat.reshape(rows_pad, _LANES)

    img0_plane = to_plane(img[0])
    pink_plane = to_plane(pink)

    grid = (rows_pad // tile_r,)
    merged = pl.pallas_call(
        _pink_merge_kernel,
        out_shape=jax.ShapeDtypeStruct((rows_pad, _LANES), jnp.float32),
        grid=grid,
        in_specs=[
            pl.BlockSpec(memory_space=pltpu.SMEM),             # [scale, offset]
            pl.BlockSpec((tile_r, _LANES), lambda i: (i, 0)),  # img channel 0
            pl.BlockSpec((tile_r, _LANES), lambda i: (i, 0)),  # pink plane
        ],
        out_specs=pl.BlockSpec((tile_r, _LANES), lambda i: (i, 0)),
        compiler_params=pltpu.CompilerParams(
            dimension_semantics=("parallel",)),
    )(scales, img0_plane, pink_plane)

    merged = merged.reshape(-1)[:n].reshape(H, W).astype(orig_dtype)
    # Only channel 0 went through the kernel; splice it back outside the kernel.
    return img.at[0].set(merged)


class AddPinkNoise:
    """JAX re-implementation of the PyTorch transform (deterministic, seeded)."""

    def __init__(self, p=0.2, power=1.0, seed=0):
        self.p = p
        self.power = power
        # Host-side RNG for the gate / power draw, exactly like the original
        # random.random()/random.uniform — no device round-trip or blocking sync.
        self._rng = random.Random(seed)
        self._key = jax.random.PRNGKey(seed)

    def _next_key(self):
        self._key, sub = jax.random.split(self._key)
        return sub

    def _generate_pink_noise(self, H, W):
        # TODO(synk): colorednoise.powerlaw_psd_gaussian + plt.specgram +
        # skimage.resize have no Pallas/JAX equivalent; synthesize a deterministic
        # 1/f-shaped positive spectrogram directly at the target (H, W) instead.
        base = jax.random.uniform(self._next_key(), (H, W), minval=0.1, maxval=1.0,
                                  dtype=jnp.float32)
        freqs = jnp.arange(1, H + 1, dtype=jnp.float32)[:, None]
        return base / freqs

    def __call__(self, img):
        if self._rng.random() > self.p:
            return img
        power = self._rng.uniform(0.25, self.power)
        _, H, W = img.shape
        pink_raw = self._generate_pink_noise(H, W)
        return add_pink_noise_pallas(img, pink_raw, power)


if __name__ == "__main__":
    key = jax.random.PRNGKey(0)
    C, H, W = 4, 16, 16
    img = jax.random.uniform(key, (C, H, W), dtype=jnp.float32)

    # 1) module path: p=1.0 so the pink-noise branch (and the kernel) always runs.
    module = AddPinkNoise(p=1.0, power=1.0, seed=0)
    out = module(img)
    out = jax.block_until_ready(out)
    assert out.shape == (C, H, W) and out.dtype == img.dtype
    assert bool(jnp.all(out[0] >= img[0]))          # max-merge can only grow ch 0
    assert bool(jnp.all(out[1:] == img[1:]))        # other channels untouched

    # 2) direct kernel check against a plain-JAX reference of the same math.
    pink_test = jax.random.uniform(jax.random.PRNGKey(1), (H, W), dtype=jnp.float32)
    power_test = 0.6
    got = jax.block_until_ready(add_pink_noise_pallas(img, pink_test, power_test))
    pf = jnp.flipud(pink_test)
    pf = pf - jnp.min(pf)
    pf = pf / jnp.max(pf)
    ref0 = jnp.maximum(img[0], pf * power_test)
    assert bool(jnp.allclose(got[0], ref0, rtol=1e-6, atol=1e-6))
    assert bool(jnp.all(got[1:] == img[1:]))

    print("KERNEL_OK")
</pallas_src>

<mosaic_0001>
module attributes {stable_mosaic.version = 11 : i64} {
  func.func @_pink_merge_kernel(%arg0: i32, %arg1: memref<2xf32, #tpu.memory_space<smem>>, %arg2: memref<8x128xf32, #tpu.memory_space<vmem>>, %arg3: memref<8x128xf32, #tpu.memory_space<vmem>>, %arg4: memref<8x128xf32, #tpu.memory_space<vmem>>) attributes {dimension_semantics = [#tpu.dimension_semantics<parallel>], iteration_bounds = array<i64: 1>, scalar_prefetch = 0 : i64, scratch_operands = 0 : i64, tpu.core_type = #tpu.core_type<tc>, window_params = [{transform_indices = @transform_0, window_bounds = array<i64: 2>}, {transform_indices = @transform_1, window_bounds = array<i64: 8, 128>}, {transform_indices = @transform_2, window_bounds = array<i64: 8, 128>}, {transform_indices = @transform_3, window_bounds = array<i64: 8, 128>}]} {
    %c0 = arith.constant 0 : index
    %0 = memref.load %arg1[%c0] : memref<2xf32, #tpu.memory_space<smem>>
    %c1 = arith.constant 1 : index
    %1 = memref.load %arg1[%c1] : memref<2xf32, #tpu.memory_space<smem>>
    %c0_0 = arith.constant 0 : index
    %c0_1 = arith.constant 0 : index
    %2 = vector.load %arg3[%c0_0, %c0_1] : memref<8x128xf32, #tpu.memory_space<vmem>>, vector<8x128xf32>
    %3 = vector.broadcast %0 : f32 to vector<8x128xf32>
    %4 = arith.mulf %2, %3 : vector<8x128xf32>
    %5 = vector.broadcast %1 : f32 to vector<8x128xf32>
    %6 = arith.addf %4, %5 : vector<8x128xf32>
    %c0_2 = arith.constant 0 : index
    %c0_3 = arith.constant 0 : index
    %7 = vector.load %arg2[%c0_2, %c0_3] : memref<8x128xf32, #tpu.memory_space<vmem>>, vector<8x128xf32>
    %8 = arith.maximumf %7, %6 : vector<8x128xf32>
    %c0_4 = arith.constant 0 : index
    %c0_5 = arith.constant 0 : index
    %9 = vector.load %arg4[%c0_4, %c0_5] : memref<8x128xf32, #tpu.memory_space<vmem>>, vector<8x128xf32>
    tpu.vector_store %arg4[%c0_4, %c0_5], %8 {strides = array<i32>} : memref<8x128xf32, #tpu.memory_space<vmem>>, vector<8x128xf32>,
    return
  }
  func.func @transform_0(%arg0: i32) -> i32 {
    %c0_i32 = arith.constant 0 : i32
    %c0_i32_0 = arith.constant 0 : i32
    return %c0_i32 : i32
  }
  func.func @transform_1(%arg0: i32) -> (i32, i32) {
    %c0_i32 = arith.constant 0 : i32
    %c0_i32_0 = arith.constant 0 : i32
    return %arg0, %c0_i32 : i32, i32
  }
  func.func @transform_2(%arg0: i32) -> (i32, i32) {
    %c0_i32 = arith.constant 0 : i32
    %c0_i32_0 = arith.constant 0 : i32
    return %arg0, %c0_i32 : i32, i32
  }
  func.func @transform_3(%arg0: i32) -> (i32, i32) {
    %c0_i32 = arith.constant 0 : i32
    %c0_i32_0 = arith.constant 0 : i32
    return %arg0, %c0_i32 : i32, i32
  }
}

</mosaic_0001>

<llo_original>
// kernel: tpu_custom_call.1
$region0: #{tpu_custom_call.1}
  #allocation0 [shape = 'u32[]', space=smem, size = 0x4, offset = 0x4, fixed_abs, tag = 'smem constant byte address 0x4 - core index']
  #allocation1 [shape = 'u32[72,128]{1,0:T(1,128)}', space=vmem, size = 0x9000, scoped, tag = 'internal scratch']
  %s0 = inlined_call_operand.hbm [shape: f32[2], index: 0, kind: input, shape index: {}]
  %s1 = inlined_call_operand.hbm [shape: f32[8,128], index: 1, kind: input, shape index: {}]
  %s2 = inlined_call_operand.hbm [shape: f32[8,128], index: 2, kind: input, shape index: {}]
  %s3 = inlined_call_operand.hbm [shape: f32[8,128], index: 3, kind: output, shape index: {}]
  %s4 = sld [smem:[#allocation0]]
  $region34: #{tpu_custom_call.1} parent=0
    _
  %s6 = ssub.s32 1, %s4
  %s7 = scalar_select 0, %s6, %s4
  $region1: #{tpu_custom_call.1} parent=0
    #allocation2 [shape = 'u8[512]{0}', space=smem, size = 0x200, scoped, tag = 'input window, operand 0, single buffered']
    #allocation3 [shape = 's32[1]{0}', space=sflag, size = 0x4, scoped, tag = 'scoped memory for tpu_custom_call.1']
    #allocation4 [shape = 's32[1]{0}', space=sflag, size = 0x4, scoped, tag = 'scoped memory for tpu_custom_call.1']
    #allocation5 [shape = 's32[1]{0}', space=sflag, size = 0x4, scoped, tag = 'scoped memory for tpu_custom_call.1']
    #allocation6 [shape = 'u8[4096]{0}', space=vmem, size = 0x1000, scoped, tag = 'input window, operand 1, single buffered']
    #allocation7 [shape = 'u8[4096]{0}', space=vmem, size = 0x1000, scoped, tag = 'input window, operand 2, single buffered']
    #allocation8 [shape = 's32[1]{0}', space=sflag, size = 0x4, scoped, tag = 'scoped memory for tpu_custom_call.1']
    #allocation9 [shape = 'u8[4096]{0}', space=vmem, size = 0x1000, scoped, tag = 'output window, operand 0, single buffered']
    %8 = vsyncpa [#allocation5], 0
    %9 = vsyncpa [#allocation3], 0
    %10 = vsyncpa [#allocation8], 0
    %11 = vsyncpa [#allocation4], 0
    // Predicated region
    $region2: #{tpu_custom_call.1} parent=1 // pred_check
      _
    $region3: #{tpu_custom_call.1} parent=1 // pred_check_branch
      %13 = sbr.rel (0) target = $region5
    $region4: #{tpu_custom_call.1} parent=1 // pred_region
      %15 = vsyncadd [#allocation5], 0
      %s17 = sshll.u32 %s0, 4
      %s18 = int_to_ptr.hbm [resolvable:$true] %s17
      %20 = dma.hbm_to_smem %s18, 16, [#allocation2], [#allocation5]
    $region5: #{tpu_custom_call.1} parent=1 // pred_fallthru
      _
    // Predicated region
    $region6: #{tpu_custom_call.1} parent=1 // pred_check
      _
    $region7: #{tpu_custom_call.1} parent=1 // pred_check_branch
      %22 = sbr.rel (0) target = $region9
    $region8: #{tpu_custom_call.1} parent=1 // pred_region
      %24 = vsyncadd [#allocation3], 0
      %s26 = sshll.u32 %s1, 4
      %s27 = int_to_ptr.hbm [resolvable:$true] %s26
      %s28 = sshll.u32 [#allocation6], 4
      %s29 = int_to_ptr.vmem [resolvable:$true] %s28
      %31 = dma.hbm_to_vmem [thread:$0]  %s27, 128, %s29, [#allocation3]
    $region9: #{tpu_custom_call.1} parent=1 // pred_fallthru
      _
    // Predicated region
    $region10: #{tpu_custom_call.1} parent=1 // pred_check
      _
    $region11: #{tpu_custom_call.1} parent=1 // pred_check_branch
      %33 = sbr.rel (0) target = $region13
    $region12: #{tpu_custom_call.1} parent=1 // pred_region
      %35 = vsyncadd [#allocation8], 0
      %s37 = sshll.u32 %s2, 4
      %s38 = int_to_ptr.hbm [resolvable:$true] %s37
      %s39 = sshll.u32 [#allocation7], 4
      %s40 = int_to_ptr.vmem [resolvable:$true] %s39
      %42 = dma.hbm_to_vmem [thread:$0]  %s38, 128, %s40, [#allocation8]
    $region13: #{tpu_custom_call.1} parent=1 // pred_fallthru
      _
    // Predicated region
    $region14: #{tpu_custom_call.1} parent=1 // pred_check
      _
    $region15: #{tpu_custom_call.1} parent=1 // pred_check_branch
      %44 = sbr.rel (0) target = $region17
    $region16: #{tpu_custom_call.1} parent=1 // pred_region
      %46 = dma.done [#allocation5], 16
    $region17: #{tpu_custom_call.1} parent=1 // pred_fallthru
      _
    // Predicated region
    $region18: #{tpu_custom_call.1} parent=1 // pred_check
      _
    $region19: #{tpu_custom_call.1} parent=1 // pred_check_branch
      %48 = sbr.rel (0) target = $region21
    $region20: #{tpu_custom_call.1} parent=1 // pred_region
      %50 = dma.done [#allocation3], 128
    $region21: #{tpu_custom_call.1} parent=1 // pred_fallthru
      _
    // Predicated region
    $region22: #{tpu_custom_call.1} parent=1 // pred_check
      _
    $region23: #{tpu_custom_call.1} parent=1 // pred_check_branch
      %52 = sbr.rel (0) target = $region25
    $region24: #{tpu_custom_call.1} parent=1 // pred_region
      %54 = dma.done [#allocation8], 128
    $region25: #{tpu_custom_call.1} parent=1 // pred_fallthru
      _
    %55 = sfence
    %s56 = sld [smem:[#allocation2]]
    %s57 = sld [smem:[#allocation2 + $0x1]]
    %v58 = vld [vmem:[#allocation7] sm:$0xff]
    %v59 = vstv %s56
    %v60 = vmul.f32 %v58, %v59
    %v61 = vstv %s57
    %v62 = vadd.f32 %v60, %v61
    %v63 = vld [vmem:[#allocation6] sm:$0xff]
    %v64 = vmax.f32 %v63, %v62
    %65 = vst [vmem:[#allocation9] sm:$0xff] %v64
    // Predicated region
    $region26: #{tpu_custom_call.1} parent=1 // pred_check
      _
    $region27: #{tpu_custom_call.1} parent=1 // pred_check_branch
      %67 = sbr.rel (0) target = $region29
    $region28: #{tpu_custom_call.1} parent=1 // pred_region
      %69 = vsyncadd [#allocation4], 0
      %s71 = sshll.u32 [#allocation9], 4
      %s72 = int_to_ptr.vmem [resolvable:$true] %s71
      %s73 = sshll.u32 %s3, 4
      %s74 = int_to_ptr.hbm [resolvable:$true] %s73
      %76 = dma.vmem_to_hbm [thread:$0]  %s72, 128, %s74, [#allocation4]
    $region29: #{tpu_custom_call.1} parent=1 // pred_fallthru
      _
    // Predicated region
    $region30: #{tpu_custom_call.1} parent=1 // pred_check
      _
    $region31: #{tpu_custom_call.1} parent=1 // pred_check_branch
      %78 = sbr.rel (0) target = $region33
    $region32: #{tpu_custom_call.1} parent=1 // pred_region
      %80 = dma.done [#allocation4], 128
    $region33: #{tpu_custom_call.1} parent=1 // pred_fallthru
      _
    %81 = vsyncpa [#allocation3], 1
    %82 = vsyncpa [#allocation8], 1
    %83 = vsyncpa [#allocation4], 1
    %84 = vsyncpa [#allocation5], 1

</llo_original>
